<compile_context>
chip_gen: v5e
topology: v5e:2x2
jax: 0.10.0
libtpu: 0.0.40
codegen_flags: <defaults>
</compile_context>

<pallas_src>
import math

import jax
import jax.numpy as jnp
from jax.experimental import pallas as pl
from jax.experimental.pallas import tpu as pltpu

_LANE = 128
_MAX_TILE_N = 1024                       # multiple of 32 (largest sublane tile)
_TARGET_BLOCK_BYTES = 2 * 1024 * 1024    # ~2 MiB VMEM per block (x4 with dbl-buffered I/O)


def _drop_path_kernel(scale_ref, x_ref, o_ref):
    # scale_ref: (tile_n, 1)      float32 per-sample scale = mask / keep_prob
    # x_ref:     (tile_n, tile_f) input tile
    # o_ref:     (tile_n, tile_f) output tile
    x = x_ref[...].astype(jnp.float32)
    o_ref[...] = (x * scale_ref[...]).astype(o_ref.dtype)


def _choose_tiles(n, f, itemsize, max_block_bytes):
    """Pick (tile_n, tile_f) so the VMEM block (incl. sublane padding) fits budget."""
    packing = max(1, 4 // itemsize)          # 1 for f32, 2 for bf16, 4 for int8
    sublane_tile = 8 * packing               # VMEM sublane tile height for this dtype
    tile_n = n if n <= _MAX_TILE_N else _MAX_TILE_N
    rows_eff = pl.cdiv(tile_n, sublane_tile) * sublane_tile  # actual VMEM rows
    max_f = max(_LANE, (max_block_bytes // (rows_eff * itemsize)) // _LANE * _LANE)
    tile_f = f if f <= max_f else max_f      # full dim allowed even if not 128-aligned
    return tile_n, tile_f


def drop_path_pallas(x, rand_u, drop_prob: float = 0.0, training: bool = False,
                     max_block_bytes: int = _TARGET_BLOCK_BYTES):
    """x: (N, ...) array. rand_u: (N,) uniform [0,1) per-sample randoms."""
    if drop_prob == 0.0 or not training:
        return x
    keep_prob = 1.0 - drop_prob

    n = x.shape[0]
    f = math.prod(x.shape[1:])
    x_flat = x.reshape(n, f)  # metadata-only reshape (contiguous), no HBM copy

    # Per-sample scale, computed once in float32 (exact Bernoulli statistics
    # and 1/keep_prob even when x is bf16).  N floats -> negligible traffic.
    scale = (
        jnp.floor(keep_prob + rand_u.astype(jnp.float32)) * (1.0 / keep_prob)
    ).reshape(n, 1)

    itemsize = jnp.dtype(x.dtype).itemsize
    tile_n, tile_f = _choose_tiles(n, f, itemsize, max_block_bytes)

    grid = (pl.cdiv(n, tile_n), pl.cdiv(f, tile_f))

    out_flat = pl.pallas_call(
        _drop_path_kernel,
        out_shape=jax.ShapeDtypeStruct((n, f), x.dtype),
        grid=grid,
        in_specs=[
            pl.BlockSpec((tile_n, 1), lambda i, j: (i, 0)),       # scale: per batch-tile
            pl.BlockSpec((tile_n, tile_f), lambda i, j: (i, j)),  # x: tiled (N, F)
        ],
        out_specs=pl.BlockSpec((tile_n, tile_f), lambda i, j: (i, j)),
        compiler_params=pltpu.CompilerParams(
            dimension_semantics=("parallel", "parallel"),  # independent tiles -> 2-TC sharding
        ),
    )(scale, x_flat)

    return out_flat.reshape(x.shape)


class DropPath:
    """JAX/Pallas port of the PyTorch DropPath module (forward pass)."""

    def __init__(self, drop_prob=None):
        self.drop_prob = drop_prob if drop_prob is not None else 0.0
        self.training = True

    def __call__(self, x, rng_key):
        # per-sample uniform randoms (equivalent of torch.rand((N,1,1,1)))
        rand_u = jax.random.uniform(rng_key, (x.shape[0],), dtype=jnp.float32)
        return drop_path_pallas(x, rand_u, self.drop_prob, self.training)


def _reference(x, rand_u, drop_prob):
    keep_prob = 1.0 - drop_prob
    mask = jnp.floor(keep_prob + rand_u.astype(jnp.float32))
    mask = mask.reshape((x.shape[0],) + (1,) * (x.ndim - 1))
    return ((x.astype(jnp.float32) / keep_prob) * mask).astype(x.dtype)


if __name__ == "__main__":
    key = jax.random.PRNGKey(0)
    kx, kr, kx2, kr2, kx3, kr3 = jax.random.split(key, 6)

    drop_prob = 0.25
    module = DropPath(drop_prob=drop_prob)
    module.training = True

    # Case 1: small NCHW conv feature map, F = 4*16*16 = 1024 (lane-aligned, single block).
    N, C, H, W = 2, 4, 16, 16
    x = jax.random.normal(kx, (N, C, H, W), dtype=jnp.float32)
    out = jax.block_until_ready(module(x, kr))
    rand_u = jax.random.uniform(kr, (N,), dtype=jnp.float32)
    ref = _reference(x, rand_u, drop_prob)
    assert out.shape == x.shape and out.dtype == x.dtype
    assert jnp.allclose(out, ref, atol=1e-5, rtol=1e-5)

    # Case 2: F = 105 (not a multiple of 128) -> full-dim lane block, masked store.
    x2 = jax.random.normal(kx2, (2, 3, 7, 5), dtype=jnp.float32)
    out2 = jax.block_until_ready(module(x2, kr2))
    rand_u2 = jax.random.uniform(kr2, (2,), dtype=jnp.float32)
    ref2 = _reference(x2, rand_u2, drop_prob)
    assert out2.shape == x2.shape and out2.dtype == x2.dtype
    assert jnp.allclose(out2, ref2, atol=1e-5, rtol=1e-5)

    # Case 3: force a tiny tile so the multi-tile grid + ragged final block path runs
    # (F = 3*7*37 = 777 -> 7 feature tiles of 128, last one partial). No wrapper padding.
    x3 = jax.random.normal(kx3, (2, 3, 7, 37), dtype=jnp.float32)
    rand_u3 = jax.random.uniform(kr3, (2,), dtype=jnp.float32)
    out3 = jax.block_until_ready(
        drop_path_pallas(x3, rand_u3, drop_prob, True, max_block_bytes=4096))
    ref3 = _reference(x3, rand_u3, drop_prob)
    assert out3.shape == x3.shape and out3.dtype == x3.dtype
    assert jnp.allclose(out3, ref3, atol=1e-5, rtol=1e-5)

    # Case 4: bf16 input (f32 compute inside the kernel, cast back to bf16).
    xb = jax.random.normal(kx, (N, C, H, W), dtype=jnp.bfloat16)
    outb = jax.block_until_ready(module(xb, kr))
    refb = _reference(xb, rand_u, drop_prob)
    assert outb.shape == xb.shape and outb.dtype == xb.dtype
    assert jnp.allclose(outb.astype(jnp.float32), refb.astype(jnp.float32),
                        atol=1e-2, rtol=1e-2)

    # Case 5: identity path (eval mode / drop_prob == 0).
    module.training = False
    out5 = jax.block_until_ready(module(x, kr))
    assert jnp.array_equal(out5, x)

    print("KERNEL_OK")
</pallas_src>

<mosaic_0001>
module attributes {stable_mosaic.version = 11 : i64} {
  func.func @_drop_path_kernel(%arg0: i32, %arg1: i32, %arg2: memref<2x1xf32, #tpu.memory_space<vmem>>, %arg3: memref<2x1024xf32, #tpu.memory_space<vmem>>, %arg4: memref<2x1024xf32, #tpu.memory_space<vmem>>) attributes {dimension_semantics = [#tpu.dimension_semantics<parallel>, #tpu.dimension_semantics<parallel>], iteration_bounds = array<i64: 1, 1>, scalar_prefetch = 0 : i64, scratch_operands = 0 : i64, tpu.core_type = #tpu.core_type<tc>, window_params = [{transform_indices = @transform_0, window_bounds = array<i64: 2, 1>}, {transform_indices = @transform_1, window_bounds = array<i64: 2, 1024>}, {transform_indices = @transform_2, window_bounds = array<i64: 2, 1024>}]} {
    %c0 = arith.constant 0 : index
    %c0_0 = arith.constant 0 : index
    %0 = vector.load %arg3[%c0, %c0_0] : memref<2x1024xf32, #tpu.memory_space<vmem>>, vector<2x1024xf32>
    %c0_1 = arith.constant 0 : index
    %c0_2 = arith.constant 0 : index
    %1 = vector.load %arg2[%c0_1, %c0_2] : memref<2x1xf32, #tpu.memory_space<vmem>>, vector<2x1xf32>
    %2 = vector.broadcast %1 : vector<2x1xf32> to vector<2x1024xf32>
    %3 = arith.mulf %0, %2 : vector<2x1024xf32>
    %c0_3 = arith.constant 0 : index
    %c0_4 = arith.constant 0 : index
    %4 = vector.load %arg4[%c0_3, %c0_4] : memref<2x1024xf32, #tpu.memory_space<vmem>>, vector<2x1024xf32>
    tpu.vector_store %arg4[%c0_3, %c0_4], %3 {strides = array<i32>} : memref<2x1024xf32, #tpu.memory_space<vmem>>, vector<2x1024xf32>,
    return
  }
  func.func @transform_0(%arg0: i32, %arg1: i32) -> (i32, i32) {
    %c0_i32 = arith.constant 0 : i32
    %c0_i32_0 = arith.constant 0 : i32
    return %arg0, %c0_i32 : i32, i32
  }
  func.func @transform_1(%arg0: i32, %arg1: i32) -> (i32, i32) {
    %c0_i32 = arith.constant 0 : i32
    return %arg0, %arg1 : i32, i32
  }
  func.func @transform_2(%arg0: i32, %arg1: i32) -> (i32, i32) {
    %c0_i32 = arith.constant 0 : i32
    return %arg0, %arg1 : i32, i32
  }
}

</mosaic_0001>

<llo_original>
// kernel: tpu_custom_call.1
$region0: #{tpu_custom_call.1}
  #allocation0 [shape = 'u32[]', space=smem, size = 0x4, offset = 0x4, fixed_abs, tag = 'smem constant byte address 0x4 - core index']
  #allocation1 [shape = 'u32[72,128]{1,0:T(1,128)}', space=vmem, size = 0x9000, scoped, tag = 'internal scratch']
  %s0 = inlined_call_operand.vmem [shape: f32[2,1], index: 0, kind: input, shape index: {}]
  %s1 = inlined_call_operand.hbm [shape: f32[2,1024], index: 1, kind: input, shape index: {}]
  %s2 = inlined_call_operand.hbm [shape: f32[2,1024], index: 2, kind: output, shape index: {}]
  %s3 = sld [smem:[#allocation0]]
  $region22: #{tpu_custom_call.1} parent=0
    _
  %s5 = ssub.s32 1, %s3
  %s6 = scalar_select 0, %s5, %s3
  $region1: #{tpu_custom_call.1} parent=0
    #allocation2 [shape = 'u8[8192]{0}', space=vmem, size = 0x2000, scoped, tag = 'input window, operand 1, single buffered']
    #allocation3 [shape = 's32[1]{0}', space=sflag, size = 0x4, scoped, tag = 'scoped memory for tpu_custom_call.1']
    #allocation4 [shape = 's32[1]{0}', space=sflag, size = 0x4, scoped, tag = 'scoped memory for tpu_custom_call.1']
    #allocation5 [shape = 'u8[8192]{0}', space=vmem, size = 0x2000, scoped, tag = 'output window, operand 0, single buffered']
    %7 = vsyncpa [#allocation3], 0
    %8 = vsyncpa [#allocation4], 0
    // Predicated region
    $region2: #{tpu_custom_call.1} parent=1 // pred_check
      _
    $region3: #{tpu_custom_call.1} parent=1 // pred_check_branch
      %10 = sbr.rel (0) target = $region5
    $region4: #{tpu_custom_call.1} parent=1 // pred_region
      _
    $region5: #{tpu_custom_call.1} parent=1 // pred_fallthru
      _
    // Predicated region
    $region6: #{tpu_custom_call.1} parent=1 // pred_check
      _
    $region7: #{tpu_custom_call.1} parent=1 // pred_check_branch
      %12 = sbr.rel (0) target = $region9
    $region8: #{tpu_custom_call.1} parent=1 // pred_region
      %14 = vsyncadd [#allocation3], 0
      %s16 = sshll.u32 %s1, 4
      %s17 = int_to_ptr.hbm [resolvable:$true] %s16
      %s18 = sshll.u32 [#allocation2], 4
      %s19 = int_to_ptr.vmem [resolvable:$true] %s18
      %21 = dma.hbm_to_vmem [thread:$0]  %s17, 256, %s19, [#allocation3]
    $region9: #{tpu_custom_call.1} parent=1 // pred_fallthru
      _
    // Predicated region
    $region10: #{tpu_custom_call.1} parent=1 // pred_check
      _
    $region11: #{tpu_custom_call.1} parent=1 // pred_check_branch
      %23 = sbr.rel (0) target = $region13
    $region12: #{tpu_custom_call.1} parent=1 // pred_region
      %25 = dma.done [#allocation3], 256
    $region13: #{tpu_custom_call.1} parent=1 // pred_fallthru
      _
    %v26 = vld [vmem:[#allocation2] sm:$0xff]
    %v27 = vld [vmem:[#allocation2 + $0x8] sm:$0xff]
    %v28 = vld [vmem:[%s0] sm:$0x3]
    %30 = vset.pattern.permute.xlu0 0
    %31 = vperm.xlu0 %30, %v28
    %v32 = vpop.permute.xlu0 %31
    %v34 = vunpack.c.l.s4 269488144
    %v35 = vunpack.c.0.s8 %v34
    %v36 = vperm.slane %v32, %v35
    %v38 = vmul.f32 %v26, %v36
    %v39 = vmul.f32 %v27, %v36
    %40 = vst [vmem:[#allocation5] sm:$0xff] %v38
    %41 = vst [vmem:[#allocation5 + $0x8] sm:$0xff] %v39
    // Predicated region
    $region14: #{tpu_custom_call.1} parent=1 // pred_check
      _
    $region15: #{tpu_custom_call.1} parent=1 // pred_check_branch
      %43 = sbr.rel (0) target = $region17
    $region16: #{tpu_custom_call.1} parent=1 // pred_region
      %45 = vsyncadd [#allocation4], 0
      %s47 = sshll.u32 [#allocation5], 4
      %s48 = int_to_ptr.vmem [resolvable:$true] %s47
      %s49 = sshll.u32 %s2, 4
      %s50 = int_to_ptr.hbm [resolvable:$true] %s49
      %52 = dma.vmem_to_hbm [thread:$0]  %s48, 256, %s50, [#allocation4]
    $region17: #{tpu_custom_call.1} parent=1 // pred_fallthru
      _
    // Predicated region
    $region18: #{tpu_custom_call.1} parent=1 // pred_check
      _
    $region19: #{tpu_custom_call.1} parent=1 // pred_check_branch
      %54 = sbr.rel (0) target = $region21
    $region20: #{tpu_custom_call.1} parent=1 // pred_region
      %56 = dma.done [#allocation4], 256
    $region21: #{tpu_custom_call.1} parent=1 // pred_fallthru
      _
    %57 = vsyncpa [#allocation3], 1
    %58 = vsyncpa [#allocation4], 1

</llo_original>
